<compile_context>
chip_gen: v5e
topology: v5e:2x2
jax: 0.10.0
libtpu: 0.0.40
codegen_flags: <defaults>
</compile_context>

<pallas_src>
import jax
import jax.numpy as jnp
import numpy as np
from jax.experimental import pallas as pl
from jax.experimental.pallas import tpu as pltpu

# ---- module hyper-parameters (from the PyTorch script) ----
D_MODEL = 64
D_FF = 512
LN_EPS = 1e-5            # torch.nn.LayerNorm default eps
HLA_MAX_LEN = 34
PEP_MAX_LEN = 11
TGT_LEN = PEP_MAX_LEN + HLA_MAX_LEN  # 45


def _round_up(x, m):
    return (x + m - 1) // m * m


def _num_tensorcores():
    """Best-effort TensorCore-per-chip count (v5e/v6e: 1, v7x: 2)."""
    try:
        info = pltpu.get_tpu_info()
        for attr in ("num_cores", "tensorcores_per_chip", "num_tensorcores",
                     "cores_per_chip", "core_count"):
            v = getattr(info, attr, None)
            if isinstance(v, int) and v > 0:
                return v
    except Exception:
        pass
    try:
        kind = jax.devices()[0].device_kind.lower()
        if "v7" in kind or "7x" in kind:
            return 2
    except Exception:
        pass
    return 1


def _choose_blocking(n8, tc, block_rows=None):
    """Pick (row-block, grid-steps) from padded row count n8 and TC count tc."""
    if block_rows is not None:
        bm = _round_up(block_rows, 8)
        steps = pl.cdiv(n8, bm)
        return bm, steps

    target_bm = 512                      # large-N row block (per review: 256 -> 512)
    if n8 > target_bm:
        steps = pl.cdiv(n8, target_bm)
        if tc > 1:
            steps = _round_up(steps, tc)     # even step count on v7x (2 TCs)
    elif tc > 1 and n8 >= 16:
        steps = tc                           # split only where a 2nd core exists
    else:
        steps = 1                            # v5e / v6e tiny-N: single grid step
    bm = _round_up(pl.cdiv(n8, steps), 8)    # derive bm from step count -> minimal padding
    return bm, steps


# ----------------------------------------------------------------------------
# Pallas kernel: fused  Linear -> ReLU -> Linear -> (+residual) -> LayerNorm
# on a [BM, D_MODEL] block of flattened (batch*seq) rows.
# Weights arrive in the MXU-operand dtype (bf16 by default); accumulation is f32.
# ----------------------------------------------------------------------------
def ffn_kernel(x_ref, w1_ref, w2_ref, out_ref):
    f32 = jnp.float32
    x = x_ref[...].astype(f32)                                       # [BM, D] f32

    # fc: Linear(d_model, d_ff, bias=False) -> ReLU -> Linear(d_ff, d_model)
    h = jnp.maximum(
        jnp.dot(x.astype(w1_ref.dtype), w1_ref[...], preferred_element_type=f32),
        0.0)                                                         # [BM, D_FF]
    y = jnp.dot(h.astype(w2_ref.dtype), w2_ref[...],
                preferred_element_type=f32) + x                      # + residual

    # fresh nn.LayerNorm(d_model): gamma=1, beta=0 ; one-pass statistics
    mu = jnp.mean(y, axis=-1, keepdims=True)
    ms = jnp.mean(y * y, axis=-1, keepdims=True)
    var = jnp.maximum(ms - mu * mu, 0.0)
    out_ref[...] = ((y - mu) * jax.lax.rsqrt(var + LN_EPS)).astype(out_ref.dtype)


# ----------------------------------------------------------------------------
# Wrapper
# ----------------------------------------------------------------------------
def poswise_ffn_forward(inputs, w1, w2, *, block_rows=None, mxu_dtype=jnp.bfloat16):
    """inputs: [B, T, D_MODEL] float32. Returns [B, T, D_MODEL] float32."""
    B, T, D = inputs.shape
    assert D == D_MODEL
    N = B * T
    x2 = inputs.reshape(N, D).astype(jnp.float32)

    tc = _num_tensorcores()
    n8 = _round_up(N, 8)
    bm, steps = _choose_blocking(n8, tc, block_rows)
    n_pad = bm * steps
    if n_pad != N:
        x2 = jnp.pad(x2, ((0, n_pad - N), (0, 0)))     # zero rows; LN of zeros is finite
    grid = (steps,)

    w1m = w1.astype(mxu_dtype)
    w2m = w2.astype(mxu_dtype)
    w_bytes = (D * D_FF + D_FF * D) * jnp.dtype(mxu_dtype).itemsize

    flops = 2 * 2 * n_pad * D * D_FF + 8 * n_pad * D          # two GEMMs + LN/elementwise
    bytes_accessed = 2 * n_pad * D * 4 + w_bytes               # in + out + both weights

    out = pl.pallas_call(
        ffn_kernel,
        out_shape=jax.ShapeDtypeStruct((n_pad, D), jnp.float32),
        grid=grid,
        in_specs=[
            pl.BlockSpec((bm, D), lambda i: (i, 0)),            # activations (row-blocked)
            pl.BlockSpec((D, D_FF), lambda i: (0, 0)),          # w1 (resident / broadcast)
            pl.BlockSpec((D_FF, D), lambda i: (0, 0)),          # w2 (resident / broadcast)
        ],
        out_specs=pl.BlockSpec((bm, D), lambda i: (i, 0)),
        compiler_params=pltpu.CompilerParams(
            dimension_semantics=("parallel",)),
        cost_estimate=pl.CostEstimate(
            flops=flops, transcendentals=0, bytes_accessed=bytes_accessed),
    )(x2, w1m, w2m)

    return out[:N].reshape(B, T, D)


# ----------------------------------------------------------------------------
# Pure-JAX reference (mirrors the PyTorch forward, full f32)
# ----------------------------------------------------------------------------
def reference_forward(inputs, w1, w2):
    h = jnp.maximum(inputs @ w1, 0.0)
    y = h @ w2 + inputs
    mu = y.mean(-1, keepdims=True)
    var = ((y - mu) ** 2).mean(-1, keepdims=True)
    return (y - mu) / jnp.sqrt(var + LN_EPS)


# ----------------------------------------------------------------------------
# Deterministic synthetic parameters (Linear layers are bias-free)
# ----------------------------------------------------------------------------
def init_params(key):
    k1, k2 = jax.random.split(key, 2)
    w1 = 0.05 * jax.random.normal(k1, (D_MODEL, D_FF), jnp.float32)
    w2 = 0.05 * jax.random.normal(k2, (D_FF, D_MODEL), jnp.float32)
    return w1, w2


if __name__ == "__main__":
    B = 2
    key = jax.random.PRNGKey(0)
    inputs = jax.random.normal(key, (B, TGT_LEN, D_MODEL), jnp.float32)
    w1, w2 = init_params(jax.random.PRNGKey(1))

    ref = reference_forward(inputs, w1, w2)

    # Exact-semantics path: f32 MXU operands, tight tolerance.
    out_f32 = jax.block_until_ready(
        poswise_ffn_forward(inputs, w1, w2, mxu_dtype=jnp.float32))
    np.testing.assert_allclose(np.asarray(out_f32), np.asarray(ref),
                               rtol=2e-4, atol=2e-4)

    # Default fast path: bf16 MXU operands, f32 accumulation.
    out_bf16 = jax.block_until_ready(poswise_ffn_forward(inputs, w1, w2))
    np.testing.assert_allclose(np.asarray(out_bf16), np.asarray(ref),
                               rtol=2e-2, atol=2e-2)

    print("KERNEL_OK")
</pallas_src>

<mosaic_0001>
module attributes {stable_mosaic.version = 11 : i64} {
  func.func @ffn_kernel(%arg0: i32, %arg1: memref<96x64xf32, #tpu.memory_space<vmem>>, %arg2: memref<64x512xf32, #tpu.memory_space<vmem>>, %arg3: memref<512x64xf32, #tpu.memory_space<vmem>>, %arg4: memref<96x64xf32, #tpu.memory_space<vmem>>) attributes {dimension_semantics = [#tpu.dimension_semantics<parallel>], iteration_bounds = array<i64: 1>, scalar_prefetch = 0 : i64, scratch_operands = 0 : i64, tpu.core_type = #tpu.core_type<tc>, window_params = [{transform_indices = @transform_0, window_bounds = array<i64: 96, 64>}, {pipeline_mode = #tpu.pipeline_mode<synchronous>, transform_indices = @transform_1, window_bounds = array<i64: 64, 512>}, {pipeline_mode = #tpu.pipeline_mode<synchronous>, transform_indices = @transform_2, window_bounds = array<i64: 512, 64>}, {transform_indices = @transform_3, window_bounds = array<i64: 96, 64>}]} {
    %c0 = arith.constant 0 : index
    %c0_0 = arith.constant 0 : index
    %0 = vector.load %arg1[%c0, %c0_0] : memref<96x64xf32, #tpu.memory_space<vmem>>, vector<96x64xf32>
    %c0_1 = arith.constant 0 : index
    %c0_2 = arith.constant 0 : index
    %1 = vector.load %arg2[%c0_1, %c0_2] : memref<64x512xf32, #tpu.memory_space<vmem>>, vector<64x512xf32>
    %cst = arith.constant dense<0.000000e+00> : vector<96x512xf32>
    %2 = tpu.matmul %0, %1, %cst {dimension_numbers = #tpu.dot_dimension_numbers<[1], [0], [0], [1], [0, 0, 1, 1], [], []>} : vector<96x64xf32>, vector<64x512xf32>, vector<96x512xf32> -> vector<96x512xf32>
    %cst_3 = arith.constant 0.000000e+00 : f32
    %3 = vector.broadcast %cst_3 : f32 to vector<96x512xf32>
    %4 = arith.maximumf %2, %3 : vector<96x512xf32>
    %c0_4 = arith.constant 0 : index
    %c0_5 = arith.constant 0 : index
    %5 = vector.load %arg3[%c0_4, %c0_5] : memref<512x64xf32, #tpu.memory_space<vmem>>, vector<512x64xf32>
    %cst_6 = arith.constant dense<0.000000e+00> : vector<96x64xf32>
    %6 = tpu.matmul %4, %5, %cst_6 {dimension_numbers = #tpu.dot_dimension_numbers<[1], [0], [0], [1], [0, 0, 1, 1], [], []>} : vector<96x512xf32>, vector<512x64xf32>, vector<96x64xf32> -> vector<96x64xf32>
    %7 = arith.addf %6, %0 : vector<96x64xf32>
    %cst_7 = arith.constant dense<0.000000e+00> : vector<96xf32>
    %8 = vector.multi_reduction <add>, %7, %cst_7 [1] : vector<96x64xf32> to vector<96xf32>
    %9 = vector.shape_cast %8 : vector<96xf32> to vector<96x1xf32>
    %cst_8 = arith.constant 6.400000e+01 : f32
    %10 = vector.broadcast %cst_8 : f32 to vector<96x1xf32>
    %11 = arith.divf %9, %10 : vector<96x1xf32>
    %12 = arith.mulf %7, %7 : vector<96x64xf32>
    %cst_9 = arith.constant dense<0.000000e+00> : vector<96xf32>
    %13 = vector.multi_reduction <add>, %12, %cst_9 [1] : vector<96x64xf32> to vector<96xf32>
    %14 = vector.shape_cast %13 : vector<96xf32> to vector<96x1xf32>
    %cst_10 = arith.constant 6.400000e+01 : f32
    %15 = vector.broadcast %cst_10 : f32 to vector<96x1xf32>
    %16 = arith.divf %14, %15 : vector<96x1xf32>
    %17 = arith.mulf %11, %11 : vector<96x1xf32>
    %18 = arith.subf %16, %17 : vector<96x1xf32>
    %cst_11 = arith.constant 0.000000e+00 : f32
    %19 = vector.broadcast %cst_11 : f32 to vector<96x1xf32>
    %20 = arith.maximumf %18, %19 : vector<96x1xf32>
    %21 = vector.broadcast %11 : vector<96x1xf32> to vector<96x64xf32>
    %22 = arith.subf %7, %21 : vector<96x64xf32>
    %cst_12 = arith.constant 9.99999974E-6 : f32
    %23 = vector.broadcast %cst_12 : f32 to vector<96x1xf32>
    %24 = arith.addf %20, %23 : vector<96x1xf32>
    %25 = math.rsqrt %24 : vector<96x1xf32>
    %26 = vector.broadcast %25 : vector<96x1xf32> to vector<96x64xf32>
    %27 = arith.mulf %22, %26 : vector<96x64xf32>
    %c0_13 = arith.constant 0 : index
    %c0_14 = arith.constant 0 : index
    %28 = vector.load %arg4[%c0_13, %c0_14] : memref<96x64xf32, #tpu.memory_space<vmem>>, vector<96x64xf32>
    tpu.vector_store %arg4[%c0_13, %c0_14], %27 {strides = array<i32>} : memref<96x64xf32, #tpu.memory_space<vmem>>, vector<96x64xf32>,
    return
  }
  func.func @transform_0(%arg0: i32) -> (i32, i32) {
    %c0_i32 = arith.constant 0 : i32
    %c0_i32_0 = arith.constant 0 : i32
    return %arg0, %c0_i32 : i32, i32
  }
  func.func @transform_1(%arg0: i32) -> (i32, i32) {
    %c0_i32 = arith.constant 0 : i32
    %c0_i32_0 = arith.constant 0 : i32
    %c0_i32_1 = arith.constant 0 : i32
    return %c0_i32, %c0_i32_0 : i32, i32
  }
  func.func @transform_2(%arg0: i32) -> (i32, i32) {
    %c0_i32 = arith.constant 0 : i32
    %c0_i32_0 = arith.constant 0 : i32
    %c0_i32_1 = arith.constant 0 : i32
    return %c0_i32, %c0_i32_0 : i32, i32
  }
  func.func @transform_3(%arg0: i32) -> (i32, i32) {
    %c0_i32 = arith.constant 0 : i32
    %c0_i32_0 = arith.constant 0 : i32
    return %arg0, %c0_i32 : i32, i32
  }
}

</mosaic_0001>

<llo_original>
// kernel: tpu_custom_call.1
$region0: #{tpu_custom_call.1}
  #allocation0 [shape = 'u32[]', space=smem, size = 0x4, offset = 0x4, fixed_abs, tag = 'smem constant byte address 0x4 - core index']
  #allocation1 [shape = 'u32[72,128]{1,0:T(1,128)}', space=vmem, size = 0x9000, scoped, tag = 'internal scratch']
  %s0 = inlined_call_operand.vmem [shape: f32[96,64], index: 0, kind: input, shape index: {}]
  %s1 = inlined_call_operand.vmem [shape: f32[64,512], index: 1, kind: input, shape index: {}]
  %s2 = inlined_call_operand.vmem [shape: f32[512,64], index: 2, kind: input, shape index: {}]
  %s3 = inlined_call_operand.vmem [shape: f32[96,64], index: 3, kind: output, shape index: {}]
  %s4 = sld [smem:[#allocation0]]
  $region22: #{tpu_custom_call.1} parent=0
    _
  %s6 = ssub.s32 1, %s4
  %s7 = scalar_select 0, %s6, %s4
  // Predicated region
  $region2: #{tpu_custom_call.1} parent=0 // pred_check
    _
  $region3: #{tpu_custom_call.1} parent=0 // pred_check_branch
    %9 = sbr.rel (0) target = $region5
  $region4: #{tpu_custom_call.1} parent=0 // pred_region
    _
  $region5: #{tpu_custom_call.1} parent=0 // pred_fallthru
    _
  // Predicated region
  $region6: #{tpu_custom_call.1} parent=0 // pred_check
    _
  $region7: #{tpu_custom_call.1} parent=0 // pred_check_branch
    %11 = sbr.rel (0) target = $region9
  $region8: #{tpu_custom_call.1} parent=0 // pred_region
    _
  $region9: #{tpu_custom_call.1} parent=0 // pred_fallthru
    _
  // Predicated region
  $region10: #{tpu_custom_call.1} parent=0 // pred_check
    _
  $region11: #{tpu_custom_call.1} parent=0 // pred_check_branch
    %13 = sbr.rel (0) target = $region13
  $region12: #{tpu_custom_call.1} parent=0 // pred_region
    _
  $region13: #{tpu_custom_call.1} parent=0 // pred_fallthru
    _
  %v14 = vld [vmem:[%s0] sm:$0xff]
  %v15 = vld [vmem:[%s0 + $0x8] sm:$0xff]
  %v16 = vld [vmem:[%s0 + $0x10] sm:$0xff]
  %v17 = vld [vmem:[%s0 + $0x18] sm:$0xff]
  %v18 = vld [vmem:[%s0 + $0x20] sm:$0xff]
  %v19 = vld [vmem:[%s0 + $0x28] sm:$0xff]
  %v20 = vld [vmem:[%s0 + $0x30] sm:$0xff]
  %v21 = vld [vmem:[%s0 + $0x38] sm:$0xff]
  %v22 = vld [vmem:[%s0 + $0x40] sm:$0xff]
  %v23 = vld [vmem:[%s0 + $0x48] sm:$0xff]
  %v24 = vld [vmem:[%s0 + $0x50] sm:$0xff]
  %v25 = vld [vmem:[%s0 + $0x58] sm:$0xff]
  %v26 = vld [vmem:[%s1] sm:$0xff]
  %v27 = vld [vmem:[%s1 + $0x8] sm:$0xff]
  %v28 = vld [vmem:[%s1 + $0x10] sm:$0xff]
  %v29 = vld [vmem:[%s1 + $0x18] sm:$0xff]
  %v30 = vld [vmem:[%s1 + $0x20] sm:$0xff]
  %v31 = vld [vmem:[%s1 + $0x28] sm:$0xff]
  %v32 = vld [vmem:[%s1 + $0x30] sm:$0xff]
  %v33 = vld [vmem:[%s1 + $0x38] sm:$0xff]
  %v34 = vld [vmem:[%s1 + $0x40] sm:$0xff]
  %v35 = vld [vmem:[%s1 + $0x48] sm:$0xff]
  %v36 = vld [vmem:[%s1 + $0x50] sm:$0xff]
  %v37 = vld [vmem:[%s1 + $0x58] sm:$0xff]
  %v38 = vld [vmem:[%s1 + $0x60] sm:$0xff]
  %v39 = vld [vmem:[%s1 + $0x68] sm:$0xff]
  %v40 = vld [vmem:[%s1 + $0x70] sm:$0xff]
  %v41 = vld [vmem:[%s1 + $0x78] sm:$0xff]
  %v42 = vld [vmem:[%s1 + $0x80] sm:$0xff]
  %v43 = vld [vmem:[%s1 + $0x88] sm:$0xff]
  %v44 = vld [vmem:[%s1 + $0x90] sm:$0xff]
  %v45 = vld [vmem:[%s1 + $0x98] sm:$0xff]
  %v46 = vld [vmem:[%s1 + $0xa0] sm:$0xff]
  %v47 = vld [vmem:[%s1 + $0xa8] sm:$0xff]
  %v48 = vld [vmem:[%s1 + $0xb0] sm:$0xff]
  %v49 = vld [vmem:[%s1 + $0xb8] sm:$0xff]
  %v50 = vld [vmem:[%s1 + $0xc0] sm:$0xff]
  %v51 = vld [vmem:[%s1 + $0xc8] sm:$0xff]
  %v52 = vld [vmem:[%s1 + $0xd0] sm:$0xff]
  %v53 = vld [vmem:[%s1 + $0xd8] sm:$0xff]
  %v54 = vld [vmem:[%s1 + $0xe0] sm:$0xff]
  %v55 = vld [vmem:[%s1 + $0xe8] sm:$0xff]
  %v56 = vld [vmem:[%s1 + $0xf0] sm:$0xff]
  %v57 = vld [vmem:[%s1 + $0xf8] sm:$0xff]
  %vm58 = vcmask 523264
  %v60 = vsel %vm58, %v14, 0
  %v63 = vsel %vm58, %v15, 0
  %v66 = vsel %vm58, %v16, 0
  %v69 = vsel %vm58, %v17, 0
  %v72 = vsel %vm58, %v18, 0
  %v75 = vsel %vm58, %v19, 0
  %v78 = vsel %vm58, %v20, 0
  %v81 = vsel %vm58, %v21, 0
  %v84 = vsel %vm58, %v22, 0
  %v87 = vsel %vm58, %v23, 0
  %v90 = vsel %vm58, %v24, 0
  %v93 = vsel %vm58, %v25, 0
  %95 = vmatpush.msra.mxu0 0.0
  %96 = vmatpush.msra.mxu0 0.0
  %97 = vmatpush.msra.mxu0 0.0
  %98 = vmatpush.msra.mxu0 0.0
  %99 = vmatpush.msra.mxu0 0.0
  %100 = vmatpush.msra.mxu0 0.0
  %101 = vmatpush.msra.mxu0 0.0
  %102 = vmatpush.msra.mxu0 0.0
  %103 = vmatpush.msra.mxu0 %v54
  %104 = vmatpush.msra.mxu0 %v50
  %105 = vmatpush.msra.mxu0 %v46
  %106 = vmatpush.msra.mxu0 %v42
  %107 = vmatpush.msra.mxu0 %v38
  %108 = vmatpush.msra.mxu0 %v34
  %109 = vmatpush.msra.mxu0 %v30
  %110 = vmatpush.msra.mxu0 %v26
  %111 = vmatmul.f32.gmra.mxu0 %v60
  %v112 = vpop.f32.mrf.mxu0
  %v113 = vadd.f32 0.0, %v112
  %114 = vmatmul.f32.gmra.mxu0 %v63
  %v115 = vpop.f32.mrf.mxu0
  %v116 = vadd.f32 0.0, %v115
  %117 = vmatmul.f32.gmra.mxu0 %v66
  %v118 = vpop.f32.mrf.mxu0
  %v119 = vadd.f32 0.0, %v118
  %120 = vmatmul.f32.gmra.mxu0 %v69
  %v121 = vpop.f32.mrf.mxu0
  %v122 = vadd.f32 0.0, %v121
  %123 = vmatmul.f32.gmra.mxu0 %v72
  %v124 = vpop.f32.mrf.mxu0
  %v125 = vadd.f32 0.0, %v124
  %126 = vmatmul.f32.gmra.mxu0 %v75
  %v127 = vpop.f32.mrf.mxu0
  %v128 = vadd.f32 0.0, %v127
  %129 = vmatmul.f32.gmra.mxu0 %v78
  %v130 = vpop.f32.mrf.mxu0
  %v131 = vadd.f32 0.0, %v130
  %132 = vmatmul.f32.gmra.mxu0 %v81
  %v133 = vpop.f32.mrf.mxu0
  %v134 = vadd.f32 0.0, %v133
  %135 = vmatmul.f32.gmra.mxu0 %v84
  %v136 = vpop.f32.mrf.mxu0
  %v137 = vadd.f32 0.0, %v136
  %138 = vmatmul.f32.gmra.mxu0 %v87
  %v139 = vpop.f32.mrf.mxu0
  %v140 = vadd.f32 0.0, %v139
  %141 = vmatmul.f32.gmra.mxu0 %v90
  %v142 = vpop.f32.mrf.mxu0
  %v143 = vadd.f32 0.0, %v142
  %144 = vmatmul.f32.gmra.mxu0 %v93
  %v145 = vpop.f32.mrf.mxu0
  %v146 = vadd.f32 0.0, %v145
  %147 = vdwg.mxu0
  %148 = vmatpush.msra.mxu0 0.0
  %149 = vmatpush.msra.mxu0 0.0
  %150 = vmatpush.msra.mxu0 0.0
  %151 = vmatpush.msra.mxu0 0.0
  %152 = vmatpush.msra.mxu0 0.0
  %153 = vmatpush.msra.mxu0 0.0
  %154 = vmatpush.msra.mxu0 0.0
  %155 = vmatpush.msra.mxu0 0.0
  %156 = vmatpush.msra.mxu0 %v55
  %157 = vmatpush.msra.mxu0 %v51
  %158 = vmatpush.msra.mxu0 %v47
  %159 = vmatpush.msra.mxu0 %v43
  %160 = vmatpush.msra.mxu0 %v39
  %161 = vmatpush.msra.mxu0 %v35
  %162 = vmatpush.msra.mxu0 %v31
  %163 = vmatpush.msra.mxu0 %v27
  %164 = vmatmul.f32.gmra.mxu0 %v60
  %v165 = vpop.f32.mrf.mxu0
  %v166 = vadd.f32 0.0, %v165
  %167 = vmatmul.f32.gmra.mxu0 %v63
  %v168 = vpop.f32.mrf.mxu0
  %v169 = vadd.f32 0.0, %v168
  %170 = vmatmul.f32.gmra.mxu0 %v66
  %v171 = vpop.f32.mrf.mxu0
  %v172 = vadd.f32 0.0, %v171
  %173 = vmatmul.f32.gmra.mxu0 %v69
  %v174 = vpop.f32.mrf.mxu0
  %v175 = vadd.f32 0.0, %v174
  %176 = vmatmul.f32.gmra.mxu0 %v72
  %v177 = vpop.f32.mrf.mxu0
  %v178 = vadd.f32 0.0, %v177
  %179 = vmatmul.f32.gmra.mxu0 %v75
  %v180 = vpop.f32.mrf.mxu0
  %v181 = vadd.f32 0.0, %v180
  %182 = vmatmul.f32.gmra.mxu0 %v78
  %v183 = vpop.f32.mrf.mxu0
  %v184 = vadd.f32 0.0, %v183
  %185 = vmatmul.f32.gmra.mxu0 %v81
  %v186 = vpop.f32.mrf.mxu0
  %v187 = vadd.f32 0.0, %v186
  %188 = vmatmul.f32.gmra.mxu0 %v84
  %v189 = vpop.f32.mrf.mxu0
  %v190 = vadd.f32 0.0, %v189
  %191 = vmatmul.f32.gmra.mxu0 %v87
  %v192 = vpop.f32.mrf.mxu0
  %v193 = vadd.f32 0.0, %v192
  %194 = vmatmul.f32.gmra.mxu0 %v90
  %v195 = vpop.f32.mrf.mxu0
  %v196 = vadd.f32 0.0, %v195
  %197 = vmatmul.f32.gmra.mxu0 %v93
  %v198 = vpop.f32.mrf.mxu0
  %v199 = vadd.f32 0.0, %v198
  %200 = vdwg.mxu0
  %201 = vmatpush.msra.mxu0 0.0
  %202 = vmatpush.msra.mxu0 0.0
  %203 = vmatpush.msra.mxu0 0.0
  %204 = vmatpush.msra.mxu0 0.0
  %205 = vmatpush.msra.mxu0 0.0
  %206 = vmatpush.msra.mxu0 0.0
  %207 = vmatpush.msra.mxu0 0.0
  %208 = vmatpush.msra.mxu0 0.0
  %209 = vmatpush.msra.mxu0 %v56
  %210 = vmatpush.msra.mxu0 %v52
  %211 = vmatpush.msra.mxu0 %v48
  %212 = vmatpush.msra.mxu0 %v44
  %213 = vmatpush.msra.mxu0 %v40
  %214 = vmatpush.msra.mxu0 %v36
  %215 = vmatpush.msra.mxu0 %v32
  %216 = vmatpush.msra.mxu0 %v28
  %217 = vmatmul.f32.gmra.mxu0 %v60
  %v218 = vpop.f32.mrf.mxu0
  %v219 = vadd.f32 0.0, %v218
  %220 = vmatmul.f32.gmra.mxu0 %v63
  %v221 = vpop.f32.mrf.mxu0
  %v222 = vadd.f32 0.0, %v221
  %223 = vmatmul.f32.gmra.mxu0 %v66
  %v224 = vpop.f32.mrf.mxu0
  %v225 = vadd.f32 0.0, %v224
  %226 = vmatmul.f32.gmra.mxu0 %v69
  %v227 = vpop.f32.mrf.mxu0
  %v228 = vadd.f32 0.0, %v227
  %229 = vmatmul.f32.gmra.mxu0 %v72
  %v230 = vpop.f32.mrf.mxu0
  %v231 = vadd.f32 0.0, %v230
  %232 = vmatmul.f32.gmra.mxu0 %v75
  %v233 = vpop.f32.mrf.mxu0
  %v234 = vadd.f32 0.0, %v233
  %235 = vmatmul.f32.gmra.mxu0 %v78
  %v236 = vpop.f32.mrf.mxu0
  %v237 = vadd.f32 0.0, %v236
  %238 = vmatmul.f32.gmra.mxu0 %v81
  %v239 = vpop.f32.mrf.mxu0
  %v240 = vadd.f32 0.0, %v239
  %241 = vmatmul.f32.gmra.mxu0 %v84
  %v242 = vpop.f32.mrf.mxu0
  %v243 = vadd.f32 0.0, %v242
  %244 = vmatmul.f32.gmra.mxu0 %v87
  %v245 = vpop.f32.mrf.mxu0
  %v246 = vadd.f32 0.0, %v245
  %247 = vmatmul.f32.gmra.mxu0 %v90
  %v248 = vpop.f32.mrf.mxu0
  %v249 = vadd.f32 0.0, %v248
  %250 = vmatmul.f32.gmra.mxu0 %v93
  %v251 = vpop.f32.mrf.mxu0
  %v252 = vadd.f32 0.0, %v251
  %253 = vdwg.mxu0
  %254 = vmatpush.msra.mxu0 0.0
  %255 = vmatpush.msra.mxu0 0.0
  %256 = vmatpush.msra.mxu0 0.0
  %257 = vmatpush.msra.mxu0 0.0
  %258 = vmatpush.msra.mxu0 0.0
  %259 = vmatpush.msra.mxu0 0.0
  %260 = vmatpush.msra.mxu0 0.0
  %261 = vmatpush.msra.mxu0 0.0
  %262 = vmatpush.msra.mxu0 %v57
  %263 = vmatpush.msra.mxu0 %v53
  %264 = vmatpush.msra.mxu0 %v49
  %265 = vmatpush.msra.mxu0 %v45
  %266 = vmatpush.msra.mxu0 %v41
  %267 = vmatpush.msra.mxu0 %v37
  %268 = vmatpush.msra.mxu0 %v33
  %269 = vmatpush.msra.mxu0 %v29
  %270 = vmatmul.f32.gmra.mxu0 %v60
  %v271 = vpop.f32.mrf.mxu0
  %v272 = vadd.f32 0.0, %v271
  %273 = vmatmul.f32.gmra.mxu0 %v63
  %v274 = vpop.f32.mrf.mxu0
  %v275 = vadd.f32 0.0, %v274
  %276 = vmatmul.f32.gmra.mxu0 %v66
  %v277 = vpop.f32.mrf.mxu0
  %v278 = vadd.f32 0.0, %v277
  %279 = vmatmul.f32.gmra.mxu0 %v69
  %v280 = vpop.f32.mrf.mxu0
  %v281 = vadd.f32 0.0, %v280
  %282 = vmatmul.f32.gmra.mxu0 %v72
  %v283 = vpop.f32.mrf.mxu0
  %v284 = vadd.f32 0.0, %v283
  %285 = vmatmul.f32.gmra.mxu0 %v75
  %v286 = vpop.f32.mrf.mxu0
  %v287 = vadd.f32 0.0, %v286
  %288 = vmatmul.f32.gmra.mxu0 %v78
  %v289 = vpop.f32.mrf.mxu0
  %v290 = vadd.f32 0.0, %v289
  %291 = vmatmul.f32.gmra.mxu0 %v81
  %v292 = vpop.f32.mrf.mxu0
  %v293 = vadd.f32 0.0, %v292
  %294 = vmatmul.f32.gmra.mxu0 %v84
  %v295 = vpop.f32.mrf.mxu0
  %v296 = vadd.f32 0.0, %v295
  %297 = vmatmul.f32.gmra.mxu0 %v87
  %v298 = vpop.f32.mrf.mxu0
  %v299 = vadd.f32 0.0, %v298
  %300 = vmatmul.f32.gmra.mxu0 %v90
  %v301 = vpop.f32.mrf.mxu0
  %v302 = vadd.f32 0.0, %v301
  %303 = vmatmul.f32.gmra.mxu0 %v93
  %v304 = vpop.f32.mrf.mxu0
  %v305 = vadd.f32 0.0, %v304
  %306 = vdwg.mxu0
  %v307 = vmax.f32 %v113, 0.0
  %v308 = vmax.f32 %v166, 0.0
  %v309 = vmax.f32 %v219, 0.0
  %v310 = vmax.f32 %v272, 0.0
  %v311 = vmax.f32 %v116, 0.0
  %v312 = vmax.f32 %v169, 0.0
  %v313 = vmax.f32 %v222, 0.0
  %v314 = vmax.f32 %v275, 0.0
  %v315 = vmax.f32 %v119, 0.0
  %v316 = vmax.f32 %v172, 0.0
  %v317 = vmax.f32 %v225, 0.0
  %v318 = vmax.f32 %v278, 0.0
  %v319 = vmax.f32 %v122, 0.0
  %v320 = vmax.f32 %v175, 0.0
  %v321 = vmax.f32 %v228, 0.0
  %v322 = vmax.f32 %v281, 0.0
  %v323 = vmax.f32 %v125, 0.0
  %v324 = vmax.f32 %v178, 0.0
  %v325 = vmax.f32 %v231, 0.0
  %v326 = vmax.f32 %v284, 0.0
  %v327 = vmax.f32 %v128, 0.0
  %v328 = vmax.f32 %v181, 0.0
  %v329 = vmax.f32 %v234, 0.0
  %v330 = vmax.f32 %v287, 0.0
  %v331 = vmax.f32 %v131, 0.0
  %v332 = vmax.f32 %v184, 0.0
  %v333 = vmax.f32 %v237, 0.0
  %v334 = vmax.f32 %v290, 0.0
  %v335 = vmax.f32 %v134, 0.0
  %v336 = vmax.f32 %v187, 0.0
  %v337 = vmax.f32 %v240, 0.0
  %v338 = vmax.f32 %v293, 0.0
  %v339 = vmax.f32 %v137, 0.0
  %v340 = vmax.f32 %v190, 0.0
  %v341 = vmax.f32 %v243, 0.0
  %v342 = vmax.f32 %v296, 0.0
  %v343 = vmax.f32 %v140, 0.0
  %v344 = vmax.f32 %v193, 0.0
  %v345 = vmax.f32 %v246, 0.0
  %v346 = vmax.f32 %v299, 0.0
  %v347 = vmax.f32 %v143, 0.0
  %v348 = vmax.f32 %v196, 0.0
  %v349 = vmax.f32 %v249, 0.0
  %v350 = vmax.f32 %v302, 0.0
  %v351 = vmax.f32 %v146, 0.0
  %v352 = vmax.f32 %v199, 0.0
  %v353 = vmax.f32 %v252, 0.0
  %v354 = vmax.f32 %v305, 0.0
  %v355 = vld [vmem:[%s2] sm:$0xff]
  %v356 = vld [vmem:[%s2 + $0x8] sm:$0xff]
  %v357 = vld [vmem:[%s2 + $0x10] sm:$0xff]
  %v358 = vld [vmem:[%s2 + $0x18] sm:$0xff]
  %v359 = vld [vmem:[%s2 + $0x20] sm:$0xff]
  %v360 = vld [vmem:[%s2 + $0x28] sm:$0xff]
  %v361 = vld [vmem:[%s2 + $0x30] sm:$0xff]
  %v362 = vld [vmem:[%s2 + $0x38] sm:$0xff]
  %v363 = vld [vmem:[%s2 + $0x40] sm:$0xff]
  %v364 = vld [vmem:[%s2 + $0x48] sm:$0xff]
  %v365 = vld [vmem:[%s2 + $0x50] sm:$0xff]
  %v366 = vld [vmem:[%s2 + $0x58] sm:$0xff]
  %v367 = vld [vmem:[%s2 + $0x60] sm:$0xff]
  %v368 = vld [vmem:[%s2 + $0x68] sm:$0xff]
  %v369 = vld [vmem:[%s2 + $0x70] sm:$0xff]
  %v370 = vld [vmem:[%s2 + $0x78] sm:$0xff]
  %v371 = vld [vmem:[%s2 + $0x80] sm:$0xff]
  %v372 = vld [vmem:[%s2 + $0x88] sm:$0xff]
  %v373 = vld [vmem:[%s2 + $0x90] sm:$0xff]
  %v374 = vld [vmem:[%s2 + $0x98] sm:$0xff]
  %v375 = vld [vmem:[%s2 + $0xa0] sm:$0xff]
  %v376 = vld [vmem:[%s2 + $0xa8] sm:$0xff]
  %v377 = vld [vmem:[%s2 + $0xb0] sm:$0xff]
  %v378 = vld [vmem:[%s2 + $0xb8] sm:$0xff]
  %v379 = vld [vmem:[%s2 + $0xc0] sm:$0xff]
  %v380 = vld [vmem:[%s2 + $0xc8] sm:$0xff]
  %v381 = vld [vmem:[%s2 + $0xd0] sm:$0xff]
  %v382 = vld [vmem:[%s2 + $0xd8] sm:$0xff]
  %v383 = vld [vmem:[%s2 + $0xe0] sm:$0xff]
  %v384 = vld [vmem:[%s2 + $0xe8] sm:$0xff]
  %v385 = vld [vmem:[%s2 + $0xf0] sm:$0xff]
  %v386 = vld [vmem:[%s2 + $0xf8] sm:$0xff]
  %v387 = vld [vmem:[%s2 + $0x100] sm:$0xff]
  %v388 = vld [vmem:[%s2 + $0x108] sm:$0xff]
  %v389 = vld [vmem:[%s2 + $0x110] sm:$0xff]
  %v390 = vld [vmem:[%s2 + $0x118] sm:$0xff]
  %v391 = vld [vmem:[%s2 + $0x120] sm:$0xff]
  %v392 = vld [vmem:[%s2 + $0x128] sm:$0xff]
  %v393 = vld [vmem:[%s2 + $0x130] sm:$0xff]
  %v394 = vld [vmem:[%s2 + $0x138] sm:$0xff]
  %v395 = vld [vmem:[%s2 + $0x140] sm:$0xff]
  %v396 = vld [vmem:[%s2 + $0x148] sm:$0xff]
  %v397 = vld [vmem:[%s2 + $0x150] sm:$0xff]
  %v398 = vld [vmem:[%s2 + $0x158] sm:$0xff]
  %v399 = vld [vmem:[%s2 + $0x160] sm:$0xff]
  %v400 = vld [vmem:[%s2 + $0x168] sm:$0xff]
  %v401 = vld [vmem:[%s2 + $0x170] sm:$0xff]
  %v402 = vld [vmem:[%s2 + $0x178] sm:$0xff]
  %v403 = vld [vmem:[%s2 + $0x180] sm:$0xff]
  %v404 = vld [vmem:[%s2 + $0x188] sm:$0xff]
  %v405 = vld [vmem:[%s2 + $0x190] sm:$0xff]
  %v406 = vld [vmem:[%s2 + $0x198] sm:$0xff]
  %v407 = vld [vmem:[%s2 + $0x1a0] sm:$0xff]
  %v408 = vld [vmem:[%s2 + $0x1a8] sm:$0xff]
  %v409 = vld [vmem:[%s2 + $0x1b0] sm:$0xff]
  %v410 = vld [vmem:[%s2 + $0x1b8] sm:$0xff]
  %v411 = vld [vmem:[%s2 + $0x1c0] sm:$0xff]
  %v412 = vld [vmem:[%s2 + $0x1c8] sm:$0xff]
  %v413 = vld [vmem:[%s2 + $0x1d0] sm:$0xff]
  %v414 = vld [vmem:[%s2 + $0x1d8] sm:$0xff]
  %v415 = vld [vmem:[%s2 + $0x1e0] sm:$0xff]
  %v416 = vld [vmem:[%s2 + $0x1e8] sm:$0xff]
  %v417 = vld [vmem:[%s2 + $0x1f0] sm:$0xff]
  %v418 = vld [vmem:[%s2 + $0x1f8] sm:$0xff]
  %419 = vmatpush.msra.mxu0 %v370
  %420 = vmatpush.msra.mxu0 %v369
  %421 = vmatpush.msra.mxu0 %v368
  %422 = vmatpush.msra.mxu0 %v367
  %423 = vmatpush.msra.mxu0 %v366
  %424 = vmatpush.msra.mxu0 %v365
  %425 = vmatpush.msra.mxu0 %v364
  %426 = vmatpush.msra.mxu0 %v363
  %427 = vmatpush.msra.mxu0 %v362
  %428 = vmatpush.msra.mxu0 %v361
  %429 = vmatpush.msra.mxu0 %v360
  %430 = vmatpush.msra.mxu0 %v359
  %431 = vmatpush.msra.mxu0 %v358
  %432 = vmatpush.msra.mxu0 %v357
  %433 = vmatpush.msra.mxu0 %v356
  %434 = vmatpush.msra.mxu0 %v355
  %435 = vmatmul.f32.gmra.mxu0 %v307
  %v436 = vpop.f32.mrf.mxu0
  %v437 = vadd.f32 %v14, %v436
  %438 = vmatmul.f32.gmra.mxu0 %v311
  %v439 = vpop.f32.mrf.mxu0
  %v440 = vadd.f32 %v15, %v439
  %441 = vmatmul.f32.gmra.mxu0 %v315
  %v442 = vpop.f32.mrf.mxu0
  %v443 = vadd.f32 %v16, %v442
  %444 = vmatmul.f32.gmra.mxu0 %v319
  %v445 = vpop.f32.mrf.mxu0
  %v446 = vadd.f32 %v17, %v445
  %447 = vmatmul.f32.gmra.mxu0 %v323
  %v448 = vpop.f32.mrf.mxu0
  %v449 = vadd.f32 %v18, %v448
  %450 = vmatmul.f32.gmra.mxu0 %v327
  %v451 = vpop.f32.mrf.mxu0
  %v452 = vadd.f32 %v19, %v451
  %453 = vmatmul.f32.gmra.mxu0 %v331
  %v454 = vpop.f32.mrf.mxu0
  %v455 = vadd.f32 %v20, %v454
  %456 = vmatmul.f32.gmra.mxu0 %v335
  %v457 = vpop.f32.mrf.mxu0
  %v458 = vadd.f32 %v21, %v457
  %459 = vmatmul.f32.gmra.mxu0 %v339
  %v460 = vpop.f32.mrf.mxu0
  %v461 = vadd.f32 %v22, %v460
  %462 = vmatmul.f32.gmra.mxu0 %v343
  %v463 = vpop.f32.mrf.mxu0
  %v464 = vadd.f32 %v23, %v463
  %465 = vmatmul.f32.gmra.mxu0 %v347
  %v466 = vpop.f32.mrf.mxu0
  %v467 = vadd.f32 %v24, %v466
  %468 = vmatmul.f32.gmra.mxu0 %v351
  %v469 = vpop.f32.mrf.mxu0
  %v470 = vadd.f32 %v25, %v469
  %471 = vdwg.mxu0
  %472 = vmatpush.msra.mxu0 %v386
  %473 = vmatpush.msra.mxu0 %v385
  %474 = vmatpush.msra.mxu0 %v384
  %475 = vmatpush.msra.mxu0 %v383
  %476 = vmatpush.msra.mxu0 %v382
  %477 = vmatpush.msra.mxu0 %v381
  %478 = vmatpush.msra.mxu0 %v380
  %479 = vmatpush.msra.mxu0 %v379
  %480 = vmatpush.msra.mxu0 %v378
  %481 = vmatpush.msra.mxu0 %v377
  %482 = vmatpush.msra.mxu0 %v376
  %483 = vmatpush.msra.mxu0 %v375
  %484 = vmatpush.msra.mxu0 %v374
  %485 = vmatpush.msra.mxu0 %v373
  %486 = vmatpush.msra.mxu0 %v372
  %487 = vmatpush.msra.mxu0 %v371
  %488 = vmatmul.f32.gmra.mxu0 %v308
  %v489 = vpop.f32.mrf.mxu0
  %v490 = vadd.f32 %v437, %v489
  %491 = vmatmul.f32.gmra.mxu0 %v312
  %v492 = vpop.f32.mrf.mxu0
  %v493 = vadd.f32 %v440, %v492
  %494 = vmatmul.f32.gmra.mxu0 %v316
  %v495 = vpop.f32.mrf.mxu0
  %v496 = vadd.f32 %v443, %v495
  %497 = vmatmul.f32.gmra.mxu0 %v320
  %v498 = vpop.f32.mrf.mxu0
  %v499 = vadd.f32 %v446, %v498
  %500 = vmatmul.f32.gmra.mxu0 %v324
  %v501 = vpop.f32.mrf.mxu0
  %v502 = vadd.f32 %v449, %v501
  %503 = vmatmul.f32.gmra.mxu0 %v328
  %v504 = vpop.f32.mrf.mxu0
  %v505 = vadd.f32 %v452, %v504
  %506 = vmatmul.f32.gmra.mxu0 %v332
  %v507 = vpop.f32.mrf.mxu0
  %v508 = vadd.f32 %v455, %v507
  %509 = vmatmul.f32.gmra.mxu0 %v336
  %v510 = vpop.f32.mrf.mxu0
  %v511 = vadd.f32 %v458, %v510
  %512 = vmatmul.f32.gmra.mxu0 %v340
  %v513 = vpop.f32.mrf.mxu0
  %v514 = vadd.f32 %v461, %v513
  %515 = vmatmul.f32.gmra.mxu0 %v344
  %v516 = vpop.f32.mrf.mxu0
  %v517 = vadd.f32 %v464, %v516
  %518 = vmatmul.f32.gmra.mxu0 %v348
  %v519 = vpop.f32.mrf.mxu0
  %v520 = vadd.f32 %v467, %v519
  %521 = vmatmul.f32.gmra.mxu0 %v352
  %v522 = vpop.f32.mrf.mxu0
  %v523 = vadd.f32 %v470, %v522
  %524 = vdwg.mxu0
  %525 = vmatpush.msra.mxu0 %v402
  %526 = vmatpush.msra.mxu0 %v401
  %527 = vmatpush.msra.mxu0 %v400
  %528 = vmatpush.msra.mxu0 %v399
  %529 = vmatpush.msra.mxu0 %v398
  %530 = vmatpush.msra.mxu0 %v397
  %531 = vmatpush.msra.mxu0 %v396
  %532 = vmatpush.msra.mxu0 %v395
  %533 = vmatpush.msra.mxu0 %v394
  %534 = vmatpush.msra.mxu0 %v393
  %535 = vmatpush.msra.mxu0 %v392
  %536 = vmatpush.msra.mxu0 %v391
  %537 = vmatpush.msra.mxu0 %v390
  %538 = vmatpush.msra.mxu0 %v389
  %539 = vmatpush.msra.mxu0 %v388
  %540 = vmatpush.msra.mxu0 %v387
  %541 = vmatmul.f32.gmra.mxu0 %v309
  %v542 = vpop.f32.mrf.mxu0
  %v543 = vadd.f32 %v490, %v542
  %544 = vmatmul.f32.gmra.mxu0 %v313
  %v545 = vpop.f32.mrf.mxu0
  %v546 = vadd.f32 %v493, %v545
  %547 = vmatmul.f32.gmra.mxu0 %v317
  %v548 = vpop.f32.mrf.mxu0
  %v549 = vadd.f32 %v496, %v548
  %550 = vmatmul.f32.gmra.mxu0 %v321
  %v551 = vpop.f32.mrf.mxu0
  %v552 = vadd.f32 %v499, %v551
  %553 = vmatmul.f32.gmra.mxu0 %v325
  %v554 = vpop.f32.mrf.mxu0
  %v555 = vadd.f32 %v502, %v554
  %556 = vmatmul.f32.gmra.mxu0 %v329
  %v557 = vpop.f32.mrf.mxu0
  %v558 = vadd.f32 %v505, %v557
  %559 = vmatmul.f32.gmra.mxu0 %v333
  %v560 = vpop.f32.mrf.mxu0
  %v561 = vadd.f32 %v508, %v560
  %562 = vmatmul.f32.gmra.mxu0 %v337
  %v563 = vpop.f32.mrf.mxu0
  %v564 = vadd.f32 %v511, %v563
  %565 = vmatmul.f32.gmra.mxu0 %v341
  %v566 = vpop.f32.mrf.mxu0
  %v567 = vadd.f32 %v514, %v566
  %568 = vmatmul.f32.gmra.mxu0 %v345
  %v569 = vpop.f32.mrf.mxu0
  %v570 = vadd.f32 %v517, %v569
  %571 = vmatmul.f32.gmra.mxu0 %v349
  %v572 = vpop.f32.mrf.mxu0
  %v573 = vadd.f32 %v520, %v572
  %574 = vmatmul.f32.gmra.mxu0 %v353
  %v575 = vpop.f32.mrf.mxu0
  %v576 = vadd.f32 %v523, %v575
  %577 = vdwg.mxu0
  %578 = vmatpush.msra.mxu0 %v418
  %579 = vmatpush.msra.mxu0 %v417
  %580 = vmatpush.msra.mxu0 %v416
  %581 = vmatpush.msra.mxu0 %v415
  %582 = vmatpush.msra.mxu0 %v414
  %583 = vmatpush.msra.mxu0 %v413
  %584 = vmatpush.msra.mxu0 %v412
  %585 = vmatpush.msra.mxu0 %v411
  %586 = vmatpush.msra.mxu0 %v410
  %587 = vmatpush.msra.mxu0 %v409
  %588 = vmatpush.msra.mxu0 %v408
  %589 = vmatpush.msra.mxu0 %v407
  %590 = vmatpush.msra.mxu0 %v406
  %591 = vmatpush.msra.mxu0 %v405
  %592 = vmatpush.msra.mxu0 %v404
  %593 = vmatpush.msra.mxu0 %v403
  %594 = vmatmul.f32.gmra.mxu0 %v310
  %v595 = vpop.f32.mrf.mxu0
  %v596 = vadd.f32 %v543, %v595
  %597 = vmatmul.f32.gmra.mxu0 %v314
  %v598 = vpop.f32.mrf.mxu0
  %v599 = vadd.f32 %v546, %v598
  %600 = vmatmul.f32.gmra.mxu0 %v318
  %v601 = vpop.f32.mrf.mxu0
  %v602 = vadd.f32 %v549, %v601
  %603 = vmatmul.f32.gmra.mxu0 %v322
  %v604 = vpop.f32.mrf.mxu0
  %v605 = vadd.f32 %v552, %v604
  %606 = vmatmul.f32.gmra.mxu0 %v326
  %v607 = vpop.f32.mrf.mxu0
  %v608 = vadd.f32 %v555, %v607
  %609 = vmatmul.f32.gmra.mxu0 %v330
  %v610 = vpop.f32.mrf.mxu0
  %v611 = vadd.f32 %v558, %v610
  %612 = vmatmul.f32.gmra.mxu0 %v334
  %v613 = vpop.f32.mrf.mxu0
  %v614 = vadd.f32 %v561, %v613
  %615 = vmatmul.f32.gmra.mxu0 %v338
  %v616 = vpop.f32.mrf.mxu0
  %v617 = vadd.f32 %v564, %v616
  %618 = vmatmul.f32.gmra.mxu0 %v342
  %v619 = vpop.f32.mrf.mxu0
  %v620 = vadd.f32 %v567, %v619
  %621 = vmatmul.f32.gmra.mxu0 %v346
  %v622 = vpop.f32.mrf.mxu0
  %v623 = vadd.f32 %v570, %v622
  %624 = vmatmul.f32.gmra.mxu0 %v350
  %v625 = vpop.f32.mrf.mxu0
  %v626 = vadd.f32 %v573, %v625
  %627 = vmatmul.f32.gmra.mxu0 %v354
  %v628 = vpop.f32.mrf.mxu0
  %v629 = vadd.f32 %v576, %v628
  %630 = vdwg.mxu0
  %v631 = vsel %vm58, %v596, 0.0
  %632 = vadd.xlane.f32.xlu0 %v631
  %v633 = vpop.xlane.xlu0 %632
  %v634 = vsel %vm58, %v599, 0.0
  %635 = vadd.xlane.f32.xlu0 %v634
  %v636 = vpop.xlane.xlu0 %635
  %v637 = vsel %vm58, %v602, 0.0
  %638 = vadd.xlane.f32.xlu0 %v637
  %v639 = vpop.xlane.xlu0 %638
  %v640 = vsel %vm58, %v605, 0.0
  %641 = vadd.xlane.f32.xlu0 %v640
  %v642 = vpop.xlane.xlu0 %641
  %v643 = vsel %vm58, %v608, 0.0
  %644 = vadd.xlane.f32.xlu0 %v643
  %v645 = vpop.xlane.xlu0 %644
  %v646 = vsel %vm58, %v611, 0.0
  %647 = vadd.xlane.f32.xlu0 %v646
  %v648 = vpop.xlane.xlu0 %647
  %v649 = vsel %vm58, %v614, 0.0
  %650 = vadd.xlane.f32.xlu0 %v649
  %v651 = vpop.xlane.xlu0 %650
  %v652 = vsel %vm58, %v617, 0.0
  %653 = vadd.xlane.f32.xlu0 %v652
  %v654 = vpop.xlane.xlu0 %653
  %v655 = vsel %vm58, %v620, 0.0
  %656 = vadd.xlane.f32.xlu0 %v655
  %v657 = vpop.xlane.xlu0 %656
  %v658 = vsel %vm58, %v623, 0.0
  %659 = vadd.xlane.f32.xlu0 %v658
  %v660 = vpop.xlane.xlu0 %659
  %v661 = vsel %vm58, %v626, 0.0
  %662 = vadd.xlane.f32.xlu0 %v661
  %v663 = vpop.xlane.xlu0 %662
  %v664 = vsel %vm58, %v629, 0.0
  %665 = vadd.xlane.f32.xlu0 %v664
  %v666 = vpop.xlane.xlu0 %665
  %v667 = vrcp.pop 64.0
  %v668 = vmul.f32 64.0, %v667
  %v669 = vsub.f32 1.0, %v668
  %v670 = vmul.f32 %v667, %v669
  %v671 = vadd.f32 %v667, %v670
  %vm672 = vweird.f32 %v667
  %v673 = vsel %vm672, %v667, %v671
  %v674 = vmul.f32 %v633, %v673
  %v675 = vmul.f32 %v636, %v673
  %v676 = vmul.f32 %v639, %v673
  %v677 = vmul.f32 %v642, %v673
  %v678 = vmul.f32 %v645, %v673
  %v679 = vmul.f32 %v648, %v673
  %v680 = vmul.f32 %v651, %v673
  %v681 = vmul.f32 %v654, %v673
  %v682 = vmul.f32 %v657, %v673
  %v683 = vmul.f32 %v660, %v673
  %v684 = vmul.f32 %v663, %v673
  %v685 = vmul.f32 %v666, %v673
  %v686 = vmul.f32 %v596, %v596
  %v687 = vmul.f32 %v599, %v599
  %v688 = vmul.f32 %v602, %v602
  %v689 = vmul.f32 %v605, %v605
  %v690 = vmul.f32 %v608, %v608
  %v691 = vmul.f32 %v611, %v611
  %v692 = vmul.f32 %v614, %v614
  %v693 = vmul.f32 %v617, %v617
  %v694 = vmul.f32 %v620, %v620
  %v695 = vmul.f32 %v623, %v623
  %v696 = vmul.f32 %v626, %v626
  %v697 = vmul.f32 %v629, %v629
  %v698 = vsel %vm58, %v686, 0.0
  %699 = vadd.xlane.f32.xlu0 %v698
  %v700 = vpop.xlane.xlu0 %699
  %v701 = vsel %vm58, %v687, 0.0
  %702 = vadd.xlane.f32.xlu0 %v701
  %v703 = vpop.xlane.xlu0 %702
  %v704 = vsel %vm58, %v688, 0.0
  %705 = vadd.xlane.f32.xlu0 %v704
  %v706 = vpop.xlane.xlu0 %705
  %v707 = vsel %vm58, %v689, 0.0
  %708 = vadd.xlane.f32.xlu0 %v707
  %v709 = vpop.xlane.xlu0 %708
  %v710 = vsel %vm58, %v690, 0.0
  %711 = vadd.xlane.f32.xlu0 %v710
  %v712 = vpop.xlane.xlu0 %711
  %v713 = vsel %vm58, %v691, 0.0
  %714 = vadd.xlane.f32.xlu0 %v713
  %v715 = vpop.xlane.xlu0 %714
  %v716 = vsel %vm58, %v692, 0.0
  %717 = vadd.xlane.f32.xlu0 %v716
  %v718 = vpop.xlane.xlu0 %717
  %v719 = vsel %vm58, %v693, 0.0
  %720 = vadd.xlane.f32.xlu0 %v719
  %v721 = vpop.xlane.xlu0 %720
  %v722 = vsel %vm58, %v694, 0.0
  %723 = vadd.xlane.f32.xlu0 %v722
  %v724 = vpop.xlane.xlu0 %723
  %v725 = vsel %vm58, %v695, 0.0
  %726 = vadd.xlane.f32.xlu0 %v725
  %v727 = vpop.xlane.xlu0 %726
  %v728 = vsel %vm58, %v696, 0.0
  %729 = vadd.xlane.f32.xlu0 %v728
  %v730 = vpop.xlane.xlu0 %729
  %v731 = vsel %vm58, %v697, 0.0
  %732 = vadd.xlane.f32.xlu0 %v731
  %v733 = vpop.xlane.xlu0 %732
  %v734 = vmul.f32 %v700, %v673
  %v735 = vmul.f32 %v703, %v673
  %v736 = vmul.f32 %v706, %v673
  %v737 = vmul.f32 %v709, %v673
  %v738 = vmul.f32 %v712, %v673
  %v739 = vmul.f32 %v715, %v673
  %v740 = vmul.f32 %v718, %v673
  %v741 = vmul.f32 %v721, %v673
  %v742 = vmul.f32 %v724, %v673
  %v743 = vmul.f32 %v727, %v673
  %v744 = vmul.f32 %v730, %v673
  %v745 = vmul.f32 %v733, %v673
  %v746 = vmul.f32 %v674, %v674
  %v747 = vmul.f32 %v675, %v675
  %v748 = vmul.f32 %v676, %v676
  %v749 = vmul.f32 %v677, %v677
  %v750 = vmul.f32 %v678, %v678
  %v751 = vmul.f32 %v679, %v679
  %v752 = vmul.f32 %v680, %v680
  %v753 = vmul.f32 %v681, %v681
  %v754 = vmul.f32 %v682, %v682
  %v755 = vmul.f32 %v683, %v683
  %v756 = vmul.f32 %v684, %v684
  %v757 = vmul.f32 %v685, %v685
  %v758 = vsub.f32 %v734, %v746
  %v759 = vsub.f32 %v735, %v747
  %v760 = vsub.f32 %v736, %v748
  %v761 = vsub.f32 %v737, %v749
  %v762 = vsub.f32 %v738, %v750
  %v763 = vsub.f32 %v739, %v751
  %v764 = vsub.f32 %v740, %v752
  %v765 = vsub.f32 %v741, %v753
  %v766 = vsub.f32 %v742, %v754
  %v767 = vsub.f32 %v743, %v755
  %v768 = vsub.f32 %v744, %v756
  %v769 = vsub.f32 %v745, %v757
  %v770 = vmax.f32 %v758, 0.0
  %v771 = vmax.f32 %v759, 0.0
  %v772 = vmax.f32 %v760, 0.0
  %v773 = vmax.f32 %v761, 0.0
  %v774 = vmax.f32 %v762, 0.0
  %v775 = vmax.f32 %v763, 0.0
  %v776 = vmax.f32 %v764, 0.0
  %v777 = vmax.f32 %v765, 0.0
  %v778 = vmax.f32 %v766, 0.0
  %v779 = vmax.f32 %v767, 0.0
  %v780 = vmax.f32 %v768, 0.0
  %v781 = vmax.f32 %v769, 0.0
  %v782 = vsub.f32 %v596, %v674
  %v783 = vsub.f32 %v599, %v675
  %v784 = vsub.f32 %v602, %v676
  %v785 = vsub.f32 %v605, %v677
  %v786 = vsub.f32 %v608, %v678
  %v787 = vsub.f32 %v611, %v679
  %v788 = vsub.f32 %v614, %v680
  %v789 = vsub.f32 %v617, %v681
  %v790 = vsub.f32 %v620, %v682
  %v791 = vsub.f32 %v623, %v683
  %v792 = vsub.f32 %v626, %v684
  %v793 = vsub.f32 %v629, %v685
  %v794 = vadd.f32 %v770, 1e-05
  %v795 = vadd.f32 %v771, 1e-05
  %v796 = vadd.f32 %v772, 1e-05
  %v797 = vadd.f32 %v773, 1e-05
  %v798 = vadd.f32 %v774, 1e-05
  %v799 = vadd.f32 %v775, 1e-05
  %v800 = vadd.f32 %v776, 1e-05
  %v801 = vadd.f32 %v777, 1e-05
  %v802 = vadd.f32 %v778, 1e-05
  %v803 = vadd.f32 %v779, 1e-05
  %v804 = vadd.f32 %v780, 1e-05
  %v805 = vadd.f32 %v781, 1e-05
  %v806 = vrsqrt.pop %v794
  %v807 = vmul.f32 %v806, %v794
  %v808 = vmul.f32 %v807, %v806
  %v809 = vmul.f32 0.5, %v808
  %v810 = vsub.f32 1.5, %v809
  %v811 = vmul.f32 %v806, %v810
  %vm812 = vweird.f32 %v794
  %vm813 = vweird.f32 %v806
  %vm814 = vmor %vm812, %vm813
  %v815 = vsel %vm814, %v806, %v811
  %v816 = vrsqrt.pop %v795
  %v817 = vmul.f32 %v816, %v795
  %v818 = vmul.f32 %v817, %v816
  %v819 = vmul.f32 0.5, %v818
  %v820 = vsub.f32 1.5, %v819
  %v821 = vmul.f32 %v816, %v820
  %vm822 = vweird.f32 %v795
  %vm823 = vweird.f32 %v816
  %vm824 = vmor %vm822, %vm823
  %v825 = vsel %vm824, %v816, %v821
  %v826 = vrsqrt.pop %v796
  %v827 = vmul.f32 %v826, %v796
  %v828 = vmul.f32 %v827, %v826
  %v829 = vmul.f32 0.5, %v828
  %v830 = vsub.f32 1.5, %v829
  %v831 = vmul.f32 %v826, %v830
  %vm832 = vweird.f32 %v796
  %vm833 = vweird.f32 %v826
  %vm834 = vmor %vm832, %vm833
  %v835 = vsel %vm834, %v826, %v831
  %v836 = vrsqrt.pop %v797
  %v837 = vmul.f32 %v836, %v797
  %v838 = vmul.f32 %v837, %v836
  %v839 = vmul.f32 0.5, %v838
  %v840 = vsub.f32 1.5, %v839
  %v841 = vmul.f32 %v836, %v840
  %vm842 = vweird.f32 %v797
  %vm843 = vweird.f32 %v836
  %vm844 = vmor %vm842, %vm843
  %v845 = vsel %vm844, %v836, %v841
  %v846 = vrsqrt.pop %v798
  %v847 = vmul.f32 %v846, %v798
  %v848 = vmul.f32 %v847, %v846
  %v849 = vmul.f32 0.5, %v848
  %v850 = vsub.f32 1.5, %v849
  %v851 = vmul.f32 %v846, %v850
  %vm852 = vweird.f32 %v798
  %vm853 = vweird.f32 %v846
  %vm854 = vmor %vm852, %vm853
  %v855 = vsel %vm854, %v846, %v851
  %v856 = vrsqrt.pop %v799
  %v857 = vmul.f32 %v856, %v799
  %v858 = vmul.f32 %v857, %v856
  %v859 = vmul.f32 0.5, %v858
  %v860 = vsub.f32 1.5, %v859
  %v861 = vmul.f32 %v856, %v860
  %vm862 = vweird.f32 %v799
  %vm863 = vweird.f32 %v856
  %vm864 = vmor %vm862, %vm863
  %v865 = vsel %vm864, %v856, %v861
  %v866 = vrsqrt.pop %v800
  %v867 = vmul.f32 %v866, %v800
  %v868 = vmul.f32 %v867, %v866
  %v869 = vmul.f32 0.5, %v868
  %v870 = vsub.f32 1.5, %v869
  %v871 = vmul.f32 %v866, %v870
  %vm872 = vweird.f32 %v800
  %vm873 = vweird.f32 %v866
  %vm874 = vmor %vm872, %vm873
  %v875 = vsel %vm874, %v866, %v871
  %v876 = vrsqrt.pop %v801
  %v877 = vmul.f32 %v876, %v801
  %v878 = vmul.f32 %v877, %v876
  %v879 = vmul.f32 0.5, %v878
  %v880 = vsub.f32 1.5, %v879
  %v881 = vmul.f32 %v876, %v880
  %vm882 = vweird.f32 %v801
  %vm883 = vweird.f32 %v876
  %vm884 = vmor %vm882, %vm883
  %v885 = vsel %vm884, %v876, %v881
  %v886 = vrsqrt.pop %v802
  %v887 = vmul.f32 %v886, %v802
  %v888 = vmul.f32 %v887, %v886
  %v889 = vmul.f32 0.5, %v888
  %v890 = vsub.f32 1.5, %v889
  %v891 = vmul.f32 %v886, %v890
  %vm892 = vweird.f32 %v802
  %vm893 = vweird.f32 %v886
  %vm894 = vmor %vm892, %vm893
  %v895 = vsel %vm894, %v886, %v891
  %v896 = vrsqrt.pop %v803
  %v897 = vmul.f32 %v896, %v803
  %v898 = vmul.f32 %v897, %v896
  %v899 = vmul.f32 0.5, %v898
  %v900 = vsub.f32 1.5, %v899
  %v901 = vmul.f32 %v896, %v900
  %vm902 = vweird.f32 %v803
  %vm903 = vweird.f32 %v896
  %vm904 = vmor %vm902, %vm903
  %v905 = vsel %vm904, %v896, %v901
  %v906 = vrsqrt.pop %v804
  %v907 = vmul.f32 %v906, %v804
  %v908 = vmul.f32 %v907, %v906
  %v909 = vmul.f32 0.5, %v908
  %v910 = vsub.f32 1.5, %v909
  %v911 = vmul.f32 %v906, %v910
  %vm912 = vweird.f32 %v804
  %vm913 = vweird.f32 %v906
  %vm914 = vmor %vm912, %vm913
  %v915 = vsel %vm914, %v906, %v911
  %v916 = vrsqrt.pop %v805
  %v917 = vmul.f32 %v916, %v805
  %v918 = vmul.f32 %v917, %v916
  %v919 = vmul.f32 0.5, %v918
  %v920 = vsub.f32 1.5, %v919
  %v921 = vmul.f32 %v916, %v920
  %vm922 = vweird.f32 %v805
  %vm923 = vweird.f32 %v916
  %vm924 = vmor %vm922, %vm923
  %v925 = vsel %vm924, %v916, %v921
  %v926 = vmul.f32 %v782, %v815
  %v927 = vmul.f32 %v783, %v825
  %v928 = vmul.f32 %v784, %v835
  %v929 = vmul.f32 %v785, %v845
  %v930 = vmul.f32 %v786, %v855
  %v931 = vmul.f32 %v787, %v865
  %v932 = vmul.f32 %v788, %v875
  %v933 = vmul.f32 %v789, %v885
  %v934 = vmul.f32 %v790, %v895
  %v935 = vmul.f32 %v791, %v905
  %v936 = vmul.f32 %v792, %v915
  %v937 = vmul.f32 %v793, %v925
  %938 = vst.msk [vmem:[%s3] sm:$0xff] %vm58, %v926
  %939 = vst.msk [vmem:[%s3 + $0x8] sm:$0xff] %vm58, %v927
  %940 = vst.msk [vmem:[%s3 + $0x10] sm:$0xff] %vm58, %v928
  %941 = vst.msk [vmem:[%s3 + $0x18] sm:$0xff] %vm58, %v929
  %942 = vst.msk [vmem:[%s3 + $0x20] sm:$0xff] %vm58, %v930
  %943 = vst.msk [vmem:[%s3 + $0x28] sm:$0xff] %vm58, %v931
  %944 = vst.msk [vmem:[%s3 + $0x30] sm:$0xff] %vm58, %v932
  %945 = vst.msk [vmem:[%s3 + $0x38] sm:$0xff] %vm58, %v933
  %946 = vst.msk [vmem:[%s3 + $0x40] sm:$0xff] %vm58, %v934
  %947 = vst.msk [vmem:[%s3 + $0x48] sm:$0xff] %vm58, %v935
  %948 = vst.msk [vmem:[%s3 + $0x50] sm:$0xff] %vm58, %v936
  %949 = vst.msk [vmem:[%s3 + $0x58] sm:$0xff] %vm58, %v937
  // Predicated region
  $region14: #{tpu_custom_call.1} parent=0 // pred_check
    _
  $region15: #{tpu_custom_call.1} parent=0 // pred_check_branch
    %951 = sbr.rel (0) target = $region17
  $region16: #{tpu_custom_call.1} parent=0 // pred_region
    _
  $region17: #{tpu_custom_call.1} parent=0 // pred_fallthru
    _
  // Predicated region
  $region18: #{tpu_custom_call.1} parent=0 // pred_check
    _
  $region19: #{tpu_custom_call.1} parent=0 // pred_check_branch
    %953 = sbr.rel (0) target = $region21
  $region20: #{tpu_custom_call.1} parent=0 // pred_region
    _
  $region21: #{tpu_custom_call.1} parent=0 // pred_fallthru
    _

</llo_original>
